<compile_context>
chip_gen: v7x
topology: tpu7x:2x2x1
jax: 0.10.0
libtpu: 0.0.40
codegen_flags: <defaults>
</compile_context>

<pallas_src>
from functools import partial

import jax
import jax.numpy as jnp
from jax.experimental import pallas as pl
from jax.experimental.pallas import tpu as pltpu


def mlp_kernel(x_ref, p_ref, o_ref, *, num_features):
    F = num_features
    x = x_ref[...]                         # (tb, F)
    p = p_ref[...]                         # (R, L) packed params (zero-padded)

    b1 = p[F:F + 1, :]                     # (1, L)  bias1 row (zeros past H)
    w2 = p[F + 1:F + 2, :]                 # (1, L)  w2^T row  (zeros past H)
    b2 = p[F + 2:F + 3, 0:1]               # (1, 1)  scalar bias2

    # fc_visual: F unrolled VPU broadcast-multiply-adds.
    # An MXU pass with K=F(=5) would be >96% zero padding + fill/drain latency.
    h = b1                                 # (1, L) -> broadcasts to (tb, L)
    for k in range(F):
        h = h + x[:, k:k + 1] * p[k:k + 1, :]
    h = jnp.maximum(h, 0.0)                # ReLU; zero-padded lanes stay 0

    # fc_final (N=1): VPU elementwise multiply + XLU lane reduce (both free
    # slots), instead of an MXU matmul using 1 output column.  Padded lanes
    # are zero in both h and w2, so they contribute nothing to the sum.
    y = jnp.sum(h * w2, axis=-1, keepdims=True) + b2     # (tb, 1)

    # Lane-dense, unmasked store: replicate the scalar result across all 128
    # output lanes; the wrapper slices lane 0.
    o_ref[...] = jnp.broadcast_to(y, o_ref.shape)


def multimodal_mlp(x_visual, w1, b1, w2, b2, *, tile_b=256):
    """x_visual: (B, F) f32, w1: (F, H), b1: (H,), w2: (H, 1), b2: (1,).

    Returns (B, 1) f32, identical to the PyTorch module's forward.
    """
    B, F = x_visual.shape
    H = w1.shape[1]

    # ---- pack every parameter into one pre-padded tile (single DMA) ----
    # rows 0..F-1 : w1[k, :]      (padded to L lanes with zeros)
    # row  F      : b1
    # row  F+1    : w2[:, 0]      (w2 transposed)
    # row  F+2    : lane 0 = b2
    R = ((F + 3 + 7) // 8) * 8             # pad rows to a sublane multiple
    L = ((H + 127) // 128) * 128           # pad hidden to a lane multiple
    params = jnp.zeros((R, L), jnp.float32)
    params = params.at[0:F, 0:H].set(w1.astype(jnp.float32))
    params = params.at[F, 0:H].set(b1.astype(jnp.float32))
    params = params.at[F + 1, 0:H].set(w2[:, 0].astype(jnp.float32))
    params = params.at[F + 2, 0].set(b2[0].astype(jnp.float32))

    # ---- pad batch to a sublane multiple; tile it if it ever grows ----
    B_pad = max(8, ((B + 7) // 8) * 8)
    if B_pad > tile_b:
        B_pad = ((B_pad + tile_b - 1) // tile_b) * tile_b
        tb = tile_b
    else:
        tb = B_pad
    x_pad = jnp.zeros((B_pad, F), jnp.float32).at[:B, :].set(
        x_visual.astype(jnp.float32))

    kernel = partial(mlp_kernel, num_features=F)
    out = pl.pallas_call(
        kernel,
        out_shape=jax.ShapeDtypeStruct((B_pad, 128), jnp.float32),
        grid=(B_pad // tb,),
        in_specs=[
            pl.BlockSpec((tb, F), lambda i: (i, 0)),
            pl.BlockSpec((R, L), lambda i: (0, 0)),    # params stay resident
        ],
        out_specs=pl.BlockSpec((tb, 128), lambda i: (i, 0)),
        compiler_params=pltpu.CompilerParams(
            dimension_semantics=("parallel",)),        # shards across TCs on v7x
    )(x_pad, params)

    # lane-dense (B_pad, 128) slab -> (B, 1)
    return out[:B, :1]


def reference(x, w1, b1, w2, b2):
    h = jnp.maximum(x @ w1 + b1, 0.0)
    return h @ w2 + b2


if __name__ == "__main__":
    # Shapes implied by the module: 5 visual features ('bpm','jitter',
    # 'consonance','bigsmall','updown'), hidden_size=64, scalar output.
    batch = 8
    input_size_visual = 5
    hidden_size = 64

    key = jax.random.PRNGKey(0)
    kx, k1, kb1, k2, kb2 = jax.random.split(key, 5)

    x = jax.random.normal(kx, (batch, input_size_visual), dtype=jnp.float32)
    # Deterministic synthetic params (uniform, roughly PyTorch's default init scale).
    w1 = jax.random.uniform(k1, (input_size_visual, hidden_size), jnp.float32,
                            minval=-0.4, maxval=0.4)
    b1 = jax.random.uniform(kb1, (hidden_size,), jnp.float32, minval=-0.4, maxval=0.4)
    w2 = jax.random.uniform(k2, (hidden_size, 1), jnp.float32,
                            minval=-0.125, maxval=0.125)
    b2 = jax.random.uniform(kb2, (1,), jnp.float32, minval=-0.125, maxval=0.125)

    out = multimodal_mlp(x, w1, b1, w2, b2)
    out = jax.block_until_ready(out)

    ref = reference(x, w1, b1, w2, b2)
    assert out.shape == (batch, 1)
    assert jnp.allclose(out, ref, atol=1e-5, rtol=1e-5), "mismatch vs reference"
    print("KERNEL_OK")
</pallas_src>

<mosaic_0001>
module attributes {stable_mosaic.version = 11 : i64} {
  func.func @mlp_kernel(%arg0: i32, %arg1: memref<8x5xf32, #tpu.memory_space<vmem>>, %arg2: memref<8x128xf32, #tpu.memory_space<vmem>>, %arg3: memref<8x128xf32, #tpu.memory_space<vmem>>) attributes {dimension_semantics = [#tpu.dimension_semantics<parallel>], iteration_bounds = array<i64: 1>, scalar_prefetch = 0 : i64, scratch_operands = 0 : i64, tpu.core_type = #tpu.core_type<tc>, window_params = [{transform_indices = @transform_0, window_bounds = array<i64: 8, 5>}, {pipeline_mode = #tpu.pipeline_mode<synchronous>, transform_indices = @transform_1, window_bounds = array<i64: 8, 128>}, {transform_indices = @transform_2, window_bounds = array<i64: 8, 128>}]} {
    %c0 = arith.constant 0 : index
    %c0_0 = arith.constant 0 : index
    %0 = vector.load %arg1[%c0, %c0_0] : memref<8x5xf32, #tpu.memory_space<vmem>>, vector<8x5xf32>
    %c0_1 = arith.constant 0 : index
    %c0_2 = arith.constant 0 : index
    %1 = vector.load %arg2[%c0_1, %c0_2] : memref<8x128xf32, #tpu.memory_space<vmem>>, vector<8x128xf32>
    %2 = vector.extract_strided_slice %1 {offsets = [5, 0], sizes = [1, 128], strides = [1, 1]} : vector<8x128xf32> to vector<1x128xf32>
    %3 = vector.extract_strided_slice %1 {offsets = [6, 0], sizes = [1, 128], strides = [1, 1]} : vector<8x128xf32> to vector<1x128xf32>
    %4 = vector.extract_strided_slice %1 {offsets = [7, 0], sizes = [1, 1], strides = [1, 1]} : vector<8x128xf32> to vector<1x1xf32>
    %5 = vector.extract_strided_slice %0 {offsets = [0, 0], sizes = [8, 1], strides = [1, 1]} : vector<8x5xf32> to vector<8x1xf32>
    %6 = vector.extract_strided_slice %1 {offsets = [0, 0], sizes = [1, 128], strides = [1, 1]} : vector<8x128xf32> to vector<1x128xf32>
    %7 = vector.broadcast %5 : vector<8x1xf32> to vector<8x128xf32>
    %8 = vector.broadcast %6 : vector<1x128xf32> to vector<8x128xf32>
    %9 = arith.mulf %7, %8 : vector<8x128xf32>
    %10 = vector.broadcast %2 : vector<1x128xf32> to vector<8x128xf32>
    %11 = arith.addf %10, %9 : vector<8x128xf32>
    %12 = vector.extract_strided_slice %0 {offsets = [0, 1], sizes = [8, 1], strides = [1, 1]} : vector<8x5xf32> to vector<8x1xf32>
    %13 = vector.extract_strided_slice %1 {offsets = [1, 0], sizes = [1, 128], strides = [1, 1]} : vector<8x128xf32> to vector<1x128xf32>
    %14 = vector.broadcast %12 : vector<8x1xf32> to vector<8x128xf32>
    %15 = vector.broadcast %13 : vector<1x128xf32> to vector<8x128xf32>
    %16 = arith.mulf %14, %15 : vector<8x128xf32>
    %17 = arith.addf %11, %16 : vector<8x128xf32>
    %18 = vector.extract_strided_slice %0 {offsets = [0, 2], sizes = [8, 1], strides = [1, 1]} : vector<8x5xf32> to vector<8x1xf32>
    %19 = vector.extract_strided_slice %1 {offsets = [2, 0], sizes = [1, 128], strides = [1, 1]} : vector<8x128xf32> to vector<1x128xf32>
    %20 = vector.broadcast %18 : vector<8x1xf32> to vector<8x128xf32>
    %21 = vector.broadcast %19 : vector<1x128xf32> to vector<8x128xf32>
    %22 = arith.mulf %20, %21 : vector<8x128xf32>
    %23 = arith.addf %17, %22 : vector<8x128xf32>
    %24 = vector.extract_strided_slice %0 {offsets = [0, 3], sizes = [8, 1], strides = [1, 1]} : vector<8x5xf32> to vector<8x1xf32>
    %25 = vector.extract_strided_slice %1 {offsets = [3, 0], sizes = [1, 128], strides = [1, 1]} : vector<8x128xf32> to vector<1x128xf32>
    %26 = vector.broadcast %24 : vector<8x1xf32> to vector<8x128xf32>
    %27 = vector.broadcast %25 : vector<1x128xf32> to vector<8x128xf32>
    %28 = arith.mulf %26, %27 : vector<8x128xf32>
    %29 = arith.addf %23, %28 : vector<8x128xf32>
    %30 = vector.extract_strided_slice %0 {offsets = [0, 4], sizes = [8, 1], strides = [1, 1]} : vector<8x5xf32> to vector<8x1xf32>
    %31 = vector.extract_strided_slice %1 {offsets = [4, 0], sizes = [1, 128], strides = [1, 1]} : vector<8x128xf32> to vector<1x128xf32>
    %32 = vector.broadcast %30 : vector<8x1xf32> to vector<8x128xf32>
    %33 = vector.broadcast %31 : vector<1x128xf32> to vector<8x128xf32>
    %34 = arith.mulf %32, %33 : vector<8x128xf32>
    %35 = arith.addf %29, %34 : vector<8x128xf32>
    %cst = arith.constant 0.000000e+00 : f32
    %36 = vector.broadcast %cst : f32 to vector<8x128xf32>
    %37 = arith.maximumf %35, %36 : vector<8x128xf32>
    %38 = vector.broadcast %3 : vector<1x128xf32> to vector<8x128xf32>
    %39 = arith.mulf %37, %38 : vector<8x128xf32>
    %cst_3 = arith.constant dense<0.000000e+00> : vector<8xf32>
    %40 = vector.multi_reduction <add>, %39, %cst_3 [1] : vector<8x128xf32> to vector<8xf32>
    %41 = vector.shape_cast %40 : vector<8xf32> to vector<8x1xf32>
    %42 = vector.broadcast %4 : vector<1x1xf32> to vector<8x1xf32>
    %43 = arith.addf %41, %42 : vector<8x1xf32>
    %44 = vector.shape_cast %43 : vector<8x1xf32> to vector<8x1xf32>
    %45 = vector.broadcast %44 : vector<8x1xf32> to vector<8x128xf32>
    %c0_4 = arith.constant 0 : index
    %c0_5 = arith.constant 0 : index
    %46 = vector.load %arg3[%c0_4, %c0_5] : memref<8x128xf32, #tpu.memory_space<vmem>>, vector<8x128xf32>
    tpu.vector_store %arg3[%c0_4, %c0_5], %45 {strides = array<i32>} : memref<8x128xf32, #tpu.memory_space<vmem>>, vector<8x128xf32>,
    return
  }
  func.func @transform_0(%arg0: i32) -> (i32, i32) {
    %c0_i32 = arith.constant 0 : i32
    %c0_i32_0 = arith.constant 0 : i32
    return %arg0, %c0_i32 : i32, i32
  }
  func.func @transform_1(%arg0: i32) -> (i32, i32) {
    %c0_i32 = arith.constant 0 : i32
    %c0_i32_0 = arith.constant 0 : i32
    %c0_i32_1 = arith.constant 0 : i32
    return %c0_i32, %c0_i32_0 : i32, i32
  }
  func.func @transform_2(%arg0: i32) -> (i32, i32) {
    %c0_i32 = arith.constant 0 : i32
    %c0_i32_0 = arith.constant 0 : i32
    return %arg0, %c0_i32 : i32, i32
  }
}

</mosaic_0001>

<llo_original>
// kernel: tpu_custom_call.1
$region0: #{tpu_custom_call.1}
  #allocation0 [shape = 'u32[]', space=smem, size = 0x4, offset = 0x4, fixed_abs, tag = 'smem constant byte address 0x4 - core index']
  #allocation1 [shape = 'u32[144,128]{1,0:T(1,128)}', space=vmem, size = 0x12000, scoped, tag = 'internal scratch']
  %s0 = inlined_call_operand.hbm [shape: f32[8,5], index: 0, kind: input, shape index: {}]
  %s1 = inlined_call_operand.hbm [shape: f32[8,128], index: 1, kind: input, shape index: {}]
  %s2 = inlined_call_operand.hbm [shape: f32[8,128], index: 2, kind: output, shape index: {}]
  %s3 = sld [smem:[#allocation0]]
  $region26: #{tpu_custom_call.1} parent=0
    _
  %s5 = ssub.s32 1, %s3
  %s6 = scalar_select 0, %s5, %s3
  $region1: #{tpu_custom_call.1} parent=0
    #allocation2 [shape = 'u8[4096]{0}', space=vmem, size = 0x1000, scoped, tag = 'input window, operand 0, single buffered']
    #allocation3 [shape = 's32[1]{0}', space=sflag, size = 0x4, scoped, tag = 'scoped memory for tpu_custom_call.1']
    #allocation4 [shape = 's32[1]{0}', space=sflag, size = 0x4, scoped, tag = 'scoped memory for tpu_custom_call.1']
    #allocation5 [shape = 'u8[4096]{0}', space=vmem, size = 0x1000, scoped, tag = 'input window, operand 1, single buffered']
    #allocation6 [shape = 's32[1]{0}', space=sflag, size = 0x4, scoped, tag = 'scoped memory for tpu_custom_call.1']
    #allocation7 [shape = 'u8[4096]{0}', space=vmem, size = 0x1000, scoped, tag = 'output window, operand 0, single buffered']
    %7 = vsyncpa [#allocation3], 0
    %8 = vsyncpa [#allocation6], 0
    %9 = vsyncpa [#allocation4], 0
    // Predicated region
    $region2: #{tpu_custom_call.1} parent=1 // pred_check
      _
    $region3: #{tpu_custom_call.1} parent=1 // pred_check_branch
      %11 = sbr.rel (0) target = $region5
    $region4: #{tpu_custom_call.1} parent=1 // pred_region
      %s13 = ssub.s32 128, 128
      %14 = vsyncadd [#allocation3], %s13
      %s16 = sshll.u32 [#allocation2], 4
      %s17 = int_to_ptr.vmem [resolvable:$true] %s16
      %19 = dma.hbm_to_vmem [thread:$0]  %s0, 128, %s17, [#allocation3]
    $region5: #{tpu_custom_call.1} parent=1 // pred_fallthru
      _
    // Predicated region
    $region6: #{tpu_custom_call.1} parent=1 // pred_check
      _
    $region7: #{tpu_custom_call.1} parent=1 // pred_check_branch
      %21 = sbr.rel (0) target = $region9
    $region8: #{tpu_custom_call.1} parent=1 // pred_region
      %s23 = ssub.s32 128, 128
      %24 = vsyncadd [#allocation6], %s23
      %s26 = sshll.u32 [#allocation5], 4
      %s27 = int_to_ptr.vmem [resolvable:$true] %s26
      %29 = dma.hbm_to_vmem [thread:$0]  %s1, 128, %s27, [#allocation6]
    $region9: #{tpu_custom_call.1} parent=1 // pred_fallthru
      _
    // Predicated region
    $region10: #{tpu_custom_call.1} parent=1 // pred_check
      _
    $region11: #{tpu_custom_call.1} parent=1 // pred_check_branch
      %31 = sbr.rel (0) target = $region13
    $region12: #{tpu_custom_call.1} parent=1 // pred_region
      %32 = dma.done [#allocation3], 128
    $region13: #{tpu_custom_call.1} parent=1 // pred_fallthru
      _
    // Predicated region
    $region14: #{tpu_custom_call.1} parent=1 // pred_check
      _
    $region15: #{tpu_custom_call.1} parent=1 // pred_check_branch
      %34 = sbr.rel (0) target = $region17
    $region16: #{tpu_custom_call.1} parent=1 // pred_region
      %35 = dma.done [#allocation6], 128
    $region17: #{tpu_custom_call.1} parent=1 // pred_fallthru
      _
    %v36 = vld [vmem:[#allocation2] sm:$0xff]
    %v37 = vld [vmem:[#allocation5] sm:$0xff]
    %39 = vset.pattern.permute.xlu0 0
    %40 = vperm.xlu0 %39, %v36
    %v41 = vpop.permute.xlu0 %40
    %v43 = vlaneseq
    %v44 = vshrl.u32 %v43, 7
    %v45 = vsub.s32 0, %v44
    %v46 = vrot.slane %v37, %v45
    %v47 = vmul.f32 %v41, %v46
    %v48 = vlaneseq
    %v49 = vshrl.u32 %v48, 7
    %v50 = vsub.s32 5, %v49
    %v51 = vrot.slane %v37, %v50
    %v52 = vadd.f32 %v51, %v47
    %53 = vset.pattern.permute.xlu0 1
    %54 = vperm.xlu0 %53, %v36
    %v55 = vpop.permute.xlu0 %54
    %v57 = vlaneseq
    %v58 = vshrl.u32 %v57, 7
    %v59 = vsub.s32 1, %v58
    %v60 = vrot.slane %v37, %v59
    %v61 = vmul.f32 %v55, %v60
    %v62 = vadd.f32 %v52, %v61
    %63 = vset.pattern.permute.xlu0 2
    %64 = vperm.xlu0 %63, %v36
    %v65 = vpop.permute.xlu0 %64
    %v67 = vlaneseq
    %v68 = vshrl.u32 %v67, 7
    %v69 = vsub.s32 2, %v68
    %v70 = vrot.slane %v37, %v69
    %v71 = vmul.f32 %v65, %v70
    %v72 = vadd.f32 %v62, %v71
    %73 = vset.pattern.permute.xlu0 3
    %74 = vperm.xlu0 %73, %v36
    %v75 = vpop.permute.xlu0 %74
    %v77 = vlaneseq
    %v78 = vshrl.u32 %v77, 7
    %v79 = vsub.s32 3, %v78
    %v80 = vrot.slane %v37, %v79
    %v81 = vmul.f32 %v75, %v80
    %v82 = vadd.f32 %v72, %v81
    %83 = vset.pattern.permute.xlu0 4
    %84 = vperm.xlu0 %83, %v36
    %v85 = vpop.permute.xlu0 %84
    %v87 = vlaneseq
    %v88 = vshrl.u32 %v87, 7
    %v89 = vsub.s32 4, %v88
    %v90 = vrot.slane %v37, %v89
    %v91 = vmul.f32 %v85, %v90
    %v92 = vadd.f32 %v82, %v91
    %v93 = vmax.f32 %v92, 0.0
    %v94 = vlaneseq
    %v95 = vshrl.u32 %v94, 7
    %v96 = vsub.s32 6, %v95
    %v97 = vrot.slane %v37, %v96
    %v98 = vmul.f32 %v93, %v97
    %99 = vadd.xlane.f32.xlu0 %v98
    %v100 = vpop.xlane.xlu0 %99
    %v101 = vlaneseq
    %v102 = vshrl.u32 %v101, 7
    %v103 = vsub.s32 7, %v102
    %v104 = vrot.slane %v37, %v103
    %v105 = vadd.f32 %v100, %v104
    %107 = vset.pattern.permute.xlu0 0
    %108 = vperm.xlu0 %107, %v105
    %v109 = vpop.permute.xlu0 %108
    %111 = vst [vmem:[#allocation7] sm:$0xff] %v109
    // Predicated region
    $region18: #{tpu_custom_call.1} parent=1 // pred_check
      _
    $region19: #{tpu_custom_call.1} parent=1 // pred_check_branch
      %113 = sbr.rel (0) target = $region21
    $region20: #{tpu_custom_call.1} parent=1 // pred_region
      %s115 = ssub.s32 128, 128
      %116 = vsyncadd [#allocation4], %s115
      %s118 = sshll.u32 [#allocation7], 4
      %s119 = int_to_ptr.vmem [resolvable:$true] %s118
      %121 = dma.vmem_to_hbm [thread:$0]  %s119, 128, %s2, [#allocation4]
    $region21: #{tpu_custom_call.1} parent=1 // pred_fallthru
      _
    // Predicated region
    $region22: #{tpu_custom_call.1} parent=1 // pred_check
      _
    $region23: #{tpu_custom_call.1} parent=1 // pred_check_branch
      %123 = sbr.rel (0) target = $region25
    $region24: #{tpu_custom_call.1} parent=1 // pred_region
      %124 = dma.done [#allocation4], 128
    $region25: #{tpu_custom_call.1} parent=1 // pred_fallthru
      _
    %125 = vsyncpa [#allocation3], 1
    %126 = vsyncpa [#allocation6], 1
    %127 = vsyncpa [#allocation4], 1

</llo_original>
